<compile_context>
chip_gen: v5e
topology: v5e:2x2
jax: 0.10.0
libtpu: 0.0.40
codegen_flags: <defaults>
</compile_context>

<pallas_src>
import functools

import jax
import jax.numpy as jnp
from jax.experimental import pallas as pl
from jax.experimental.pallas import tpu as pltpu


# --------------------------------------------------------------------------
# Kernels
# --------------------------------------------------------------------------

def _fused_kernel(x_ref, w1t_ref, b1_ref, w2t_ref, b2_ref, o_ref,
                  *, hw_valid, padded):
    """Single-phase kernel: whole (Bt, C, HW_pad) block resident in VMEM."""
    bt = x_ref.shape[0]
    hw_pad = x_ref.shape[2]

    # Streaming f32 cast that only feeds the reductions (not kept for the gate).
    xf = x_ref[...].astype(jnp.float32)                 # (Bt, C, HW_pad)
    avg = jnp.sum(xf, axis=-1) * (1.0 / hw_valid)       # zeros in pad are neutral
    if padded:
        lane = jax.lax.broadcasted_iota(jnp.int32, (1, 1, hw_pad), 2)
        mx = jnp.max(jnp.where(lane < hw_valid, xf, -jnp.inf), axis=-1)
    else:
        mx = jnp.max(xf, axis=-1)                       # (Bt, C)

    # Fused MLP over both pooled stats: one (2*Bt, C) RHS -> two matmuls total.
    stats = jnp.concatenate([avg, mx], axis=0)          # (2*Bt, C)
    h = jnp.dot(stats, w1t_ref[...],
                preferred_element_type=jnp.float32) + b1_ref[...]   # (2*Bt, Cr)
    h = h * jax.nn.sigmoid(h)                           # SiLU
    out = jnp.dot(h, w2t_ref[...],
                  preferred_element_type=jnp.float32) + b2_ref[...]  # (2*Bt, C)

    logits = out[:bt] + out[bt:]                        # avg branch + max branch
    scale = jax.nn.sigmoid(logits).astype(o_ref.dtype)  # cast once, before bcast

    # Gate re-reads x in its native dtype; lane-dense store.
    o_ref[...] = x_ref[...] * scale[:, :, None]


def _two_phase_kernel(x_ref, w1t_ref, b1_ref, w2t_ref, b2_ref, o_ref,
                      sum_acc, max_acc, scale_buf,
                      *, hw_valid, hw_tile, padded):
    """Two-phase kernel for feature maps too large to keep resident.

    grid = (batch, phase, hw_tiles).  Phase 0 accumulates sum/max over HW
    tiles; at its last tile the MLP runs and the sigmoid gate is stashed in
    VMEM scratch.  Phase 1 re-streams the same x tiles and applies the gate.
    """
    bt = x_ref.shape[0]
    p = pl.program_id(1)
    h = pl.program_id(2)
    nh = pl.num_programs(2)

    @pl.when(jnp.logical_and(p == 0, h == 0))
    def _():
        sum_acc[...] = jnp.zeros_like(sum_acc)
        max_acc[...] = jnp.full_like(max_acc, -jnp.inf)

    @pl.when(p == 0)
    def _():
        xf = x_ref[...].astype(jnp.float32)             # (Bt, C, HWt)
        sum_acc[...] += jnp.sum(xf, axis=-1)
        if padded:
            lane = (jax.lax.broadcasted_iota(jnp.int32, (1, 1, hw_tile), 2)
                    + h * hw_tile)
            xm = jnp.where(lane < hw_valid, xf, -jnp.inf)
        else:
            xm = xf
        max_acc[...] = jnp.maximum(max_acc[...], jnp.max(xm, axis=-1))

    @pl.when(jnp.logical_and(p == 0, h == nh - 1))
    def _():
        avg = sum_acc[...] * (1.0 / hw_valid)            # (Bt, C)
        stats = jnp.concatenate([avg, max_acc[...]], axis=0)
        hh = jnp.dot(stats, w1t_ref[...],
                     preferred_element_type=jnp.float32) + b1_ref[...]
        hh = hh * jax.nn.sigmoid(hh)                     # SiLU
        out = jnp.dot(hh, w2t_ref[...],
                      preferred_element_type=jnp.float32) + b2_ref[...]
        logits = out[:bt] + out[bt:]
        scale_buf[...] = jax.nn.sigmoid(logits)

    @pl.when(p == 1)
    def _():
        scale = scale_buf[...].astype(o_ref.dtype)
        o_ref[...] = x_ref[...] * scale[:, :, None]


# --------------------------------------------------------------------------
# Tiling helpers
# --------------------------------------------------------------------------

def _choose_batch_tile(B, f32_bytes_per_batch, target_bytes=8 << 20):
    """Largest divisor of B whose f32-equivalent block stays under target_bytes.

    Prefer an EVEN grid length (keeps both v7x TensorCores loaded), then any
    grid length >= 2, then the largest fitting tile."""
    divisors = [d for d in range(1, B + 1) if B % d == 0]
    fitting = [d for d in divisors if d * f32_bytes_per_batch <= target_bytes] or [1]
    even_steps = [d for d in fitting if (B // d) >= 2 and (B // d) % 2 == 0]
    multi_step = [d for d in fitting if (B // d) >= 2]
    if even_steps:
        return max(even_steps)
    if multi_step:
        return max(multi_step)
    return max(fitting)


def _vmem_capacity_bytes():
    try:
        info = pltpu.get_tpu_info()
        return int(getattr(info, "vmem_capacity_bytes", 64 << 20))
    except Exception:  # pragma: no cover - conservative fallback (v7x per-TC)
        return 64 << 20


# --------------------------------------------------------------------------
# Wrapper
# --------------------------------------------------------------------------

def channel_attention(x_nchw, w1, b1, w2, b2, *, force_two_phase=False,
                      hw_tile=None):
    """x_nchw: (B, C, H, W) float32/bfloat16.  w1/b1/w2/b2 in PyTorch nn.Linear
    layout: w1 (Cr, C), b1 (Cr,), w2 (C, Cr), b2 (C,)."""
    B, C, H, W = x_nchw.shape
    HW = H * W
    Cr = w1.shape[0]

    # Lane-density guard: pad the spatial axis to a multiple of 128.
    HW_pad = ((HW + 127) // 128) * 128
    padded = HW_pad != HW
    x = x_nchw.reshape(B, C, HW)
    if padded:
        x = jnp.pad(x, ((0, 0), (0, 0), (0, HW_pad - HW)))

    # Pre-transpose weights to (in, out) so the kernel is row-major matmul only.
    w1t = jnp.asarray(w1, jnp.float32).T             # (C, Cr)
    w2t = jnp.asarray(w2, jnp.float32).T             # (Cr, C)
    b1r = jnp.asarray(b1, jnp.float32).reshape(1, Cr)
    b2r = jnp.asarray(b2, jnp.float32).reshape(1, C)

    elem_bytes = jnp.dtype(x.dtype).itemsize
    native_pb = C * HW_pad * elem_bytes              # native bytes per batch row
    f32_pb = C * HW_pad * 4                          # f32-equivalent per batch row
    weight_bytes = 4 * (w1t.size + w2t.size + b1r.size + b2r.size)
    slack = 4 << 20

    vmem_cap = _vmem_capacity_bytes()
    vmem_budget = int(0.85 * vmem_cap)

    # Single-phase working set at Bt=1: 2x in + 2x out (double-buffered) plus
    # the transient f32 cast feeding the reductions.
    single_ws_bt1 = 4 * native_pb + 2 * f32_pb + weight_bytes + slack
    use_two_phase = force_two_phase or (single_ws_bt1 > vmem_budget)

    if not use_two_phase:
        Bt = _choose_batch_tile(B, f32_pb)
        working = Bt * (4 * native_pb + 2 * f32_pb) + weight_bytes + slack
        vmem_limit = min(int(0.9 * vmem_cap), max(32 << 20, working))
        kernel = functools.partial(_fused_kernel, hw_valid=HW, padded=padded)
        out = pl.pallas_call(
            kernel,
            out_shape=jax.ShapeDtypeStruct((B, C, HW_pad), x.dtype),
            grid_spec=pltpu.PrefetchScalarGridSpec(
                num_scalar_prefetch=0,
                grid=(B // Bt,),
                in_specs=[
                    pl.BlockSpec((Bt, C, HW_pad), lambda i: (i, 0, 0)),
                    pl.BlockSpec((C, Cr), lambda i: (0, 0)),
                    pl.BlockSpec((1, Cr), lambda i: (0, 0)),
                    pl.BlockSpec((Cr, C), lambda i: (0, 0)),
                    pl.BlockSpec((1, C), lambda i: (0, 0)),
                ],
                out_specs=pl.BlockSpec((Bt, C, HW_pad), lambda i: (i, 0, 0)),
            ),
            compiler_params=pltpu.CompilerParams(
                dimension_semantics=("parallel",),
                vmem_limit_bytes=vmem_limit,
            ),
        )(x, w1t, b1r, w2t, b2r)
    else:
        # Two-phase fallback: Bt=1, tile the spatial axis.
        Bt = 1
        unit_native = C * 128 * elem_bytes
        unit_f32 = C * 128 * 4
        unit_cost = 4 * unit_native + 2 * unit_f32
        budget = max(unit_cost, vmem_budget - weight_bytes - slack)
        if hw_tile is not None and hw_tile % 128 == 0 and HW_pad % hw_tile == 0:
            HWt = int(hw_tile)
        else:
            m = HW_pad // 128
            max_units = max(1, budget // unit_cost)
            divs = [d for d in range(1, m + 1) if m % d == 0 and d <= max_units] or [1]
            HWt = 128 * max(divs)
        nh = HW_pad // HWt

        native_tile = C * HWt * elem_bytes
        f32_tile = C * HWt * 4
        working = (4 * native_tile + 2 * f32_tile + 3 * Bt * C * 4
                   + weight_bytes + slack)
        vmem_limit = min(int(0.9 * vmem_cap), max(32 << 20, working))
        kernel = functools.partial(_two_phase_kernel, hw_valid=HW,
                                   hw_tile=HWt, padded=padded)
        out = pl.pallas_call(
            kernel,
            out_shape=jax.ShapeDtypeStruct((B, C, HW_pad), x.dtype),
            grid_spec=pltpu.PrefetchScalarGridSpec(
                num_scalar_prefetch=0,
                grid=(B // Bt, 2, nh),
                in_specs=[
                    pl.BlockSpec((Bt, C, HWt), lambda b, p, h: (b, 0, h)),
                    pl.BlockSpec((C, Cr), lambda b, p, h: (0, 0)),
                    pl.BlockSpec((1, Cr), lambda b, p, h: (0, 0)),
                    pl.BlockSpec((Cr, C), lambda b, p, h: (0, 0)),
                    pl.BlockSpec((1, C), lambda b, p, h: (0, 0)),
                ],
                # Phase 0 pins the output block index to 0 (h * p == 0), so no
                # uninitialized output buffer is ever written back to HBM;
                # phase 1 then streams lane-dense blocks in order.
                out_specs=pl.BlockSpec((Bt, C, HWt),
                                       lambda b, p, h: (b, 0, h * p)),
                scratch_shapes=[
                    pltpu.VMEM((Bt, C), jnp.float32),   # running sum
                    pltpu.VMEM((Bt, C), jnp.float32),   # running max
                    pltpu.VMEM((Bt, C), jnp.float32),   # sigmoid gate
                ],
            ),
            compiler_params=pltpu.CompilerParams(
                dimension_semantics=("parallel", "arbitrary", "arbitrary"),
                vmem_limit_bytes=vmem_limit,
            ),
        )(x, w1t, b1r, w2t, b2r)

    if padded:
        out = out[..., :HW]
    return out.reshape(B, C, H, W)


# --------------------------------------------------------------------------
# Pure-JAX reference mirroring the PyTorch forward
# --------------------------------------------------------------------------

def channel_attention_ref(x, w1, b1, w2, b2):
    avg = jnp.mean(x, axis=(2, 3))                   # AdaptiveAvgPool2d(1)
    mx = jnp.max(x, axis=(2, 3))                     # AdaptiveMaxPool2d(1)

    def mlp(v):                                      # shared MLP (same weights)
        h = v @ w1.T + b1
        h = h * jax.nn.sigmoid(h)                    # SiLU
        return h @ w2.T + b2

    out = mlp(avg) + mlp(mx)                         # (B, C)
    scale = jax.nn.sigmoid(out)[:, :, None, None]
    return x * scale


if __name__ == "__main__":
    B, C, H, W = 2, 64, 16, 16
    reduction_ratio = 16
    Cr = C // reduction_ratio                        # 4

    key = jax.random.PRNGKey(0)
    kx, kw1, kb1, kw2, kb2 = jax.random.split(key, 5)

    x = jax.random.normal(kx, (B, C, H, W), dtype=jnp.float32)
    # nn.Linear layout: weight is (out_features, in_features)
    w1 = jax.random.normal(kw1, (Cr, C), dtype=jnp.float32) * 0.1
    b1 = jax.random.normal(kb1, (Cr,), dtype=jnp.float32) * 0.1
    w2 = jax.random.normal(kw2, (C, Cr), dtype=jnp.float32) * 0.1
    b2 = jax.random.normal(kb2, (C,), dtype=jnp.float32) * 0.1

    y_ref = channel_attention_ref(x, w1, b1, w2, b2)

    # Main (single-phase, block-resident) path.
    y = jax.block_until_ready(channel_attention(x, w1, b1, w2, b2))
    assert y.shape == (B, C, H, W)
    assert jnp.allclose(y, y_ref, atol=1e-5, rtol=1e-5), "fused path mismatch"

    # Exercise the two-phase HW-tiled fallback on the same inputs.
    y2 = jax.block_until_ready(
        channel_attention(x, w1, b1, w2, b2, force_two_phase=True, hw_tile=128))
    assert jnp.allclose(y2, y_ref, atol=1e-5, rtol=1e-5), "two-phase path mismatch"

    print("KERNEL_OK")
</pallas_src>

<mosaic_0001>
module attributes {stable_mosaic.version = 11 : i64} {
  func.func @_fused_kernel(%arg0: i32, %arg1: memref<1x64x256xf32, #tpu.memory_space<vmem>>, %arg2: memref<64x4xf32, #tpu.memory_space<vmem>>, %arg3: memref<1x4xf32, #tpu.memory_space<vmem>>, %arg4: memref<4x64xf32, #tpu.memory_space<vmem>>, %arg5: memref<1x64xf32, #tpu.memory_space<vmem>>, %arg6: memref<1x64x256xf32, #tpu.memory_space<vmem>>) attributes {dimension_semantics = [#tpu.dimension_semantics<parallel>], iteration_bounds = array<i64: 2>, scalar_prefetch = 0 : i64, scratch_operands = 0 : i64, tpu.core_type = #tpu.core_type<tc>, window_params = [{transform_indices = @transform_0, window_bounds = array<i64: 1, 64, 256>}, {pipeline_mode = #tpu.pipeline_mode<synchronous>, transform_indices = @transform_1, window_bounds = array<i64: 64, 4>}, {pipeline_mode = #tpu.pipeline_mode<synchronous>, transform_indices = @transform_2, window_bounds = array<i64: 1, 4>}, {pipeline_mode = #tpu.pipeline_mode<synchronous>, transform_indices = @transform_3, window_bounds = array<i64: 4, 64>}, {pipeline_mode = #tpu.pipeline_mode<synchronous>, transform_indices = @transform_4, window_bounds = array<i64: 1, 64>}, {transform_indices = @transform_5, window_bounds = array<i64: 1, 64, 256>}]} {
    %c0 = arith.constant 0 : index
    %c0_0 = arith.constant 0 : index
    %c0_1 = arith.constant 0 : index
    %0 = vector.load %arg1[%c0, %c0_0, %c0_1] : memref<1x64x256xf32, #tpu.memory_space<vmem>>, vector<1x64x256xf32>
    %cst = arith.constant dense<0.000000e+00> : vector<1x64xf32>
    %1 = vector.multi_reduction <add>, %0, %cst [2] : vector<1x64x256xf32> to vector<1x64xf32>
    %cst_2 = arith.constant 3.906250e-03 : f32
    %2 = vector.broadcast %cst_2 : f32 to vector<1x64xf32>
    %3 = arith.mulf %1, %2 : vector<1x64xf32>
    %cst_3 = arith.constant dense<0xFF800000> : vector<1x64xf32>
    %4 = vector.multi_reduction <maximumf>, %0, %cst_3 [2] : vector<1x64x256xf32> to vector<1x64xf32>
    %5 = tpu.concatenate %3, %4 in 0 : vector<1x64xf32>, vector<1x64xf32> -> vector<2x64xf32>
    %c0_4 = arith.constant 0 : index
    %c0_5 = arith.constant 0 : index
    %6 = vector.load %arg2[%c0_4, %c0_5] : memref<64x4xf32, #tpu.memory_space<vmem>>, vector<64x4xf32>
    %cst_6 = arith.constant dense<0.000000e+00> : vector<2x4xf32>
    %7 = tpu.matmul %5, %6, %cst_6 {dimension_numbers = #tpu.dot_dimension_numbers<[1], [0], [0], [1], [0, 0, 1, 1], [], []>} : vector<2x64xf32>, vector<64x4xf32>, vector<2x4xf32> -> vector<2x4xf32>
    %c0_7 = arith.constant 0 : index
    %c0_8 = arith.constant 0 : index
    %8 = vector.load %arg3[%c0_7, %c0_8] : memref<1x4xf32, #tpu.memory_space<vmem>>, vector<1x4xf32>
    %9 = vector.broadcast %8 : vector<1x4xf32> to vector<2x4xf32>
    %10 = arith.addf %7, %9 : vector<2x4xf32>
    %11 = arith.negf %10 : vector<2x4xf32>
    %12 = math.exp %11 : vector<2x4xf32>
    %cst_9 = arith.constant 1.000000e+00 : f32
    %13 = vector.broadcast %cst_9 : f32 to vector<2x4xf32>
    %14 = arith.addf %13, %12 : vector<2x4xf32>
    %15 = arith.divf %13, %14 : vector<2x4xf32>
    %16 = arith.mulf %10, %15 : vector<2x4xf32>
    %c0_10 = arith.constant 0 : index
    %c0_11 = arith.constant 0 : index
    %17 = vector.load %arg4[%c0_10, %c0_11] : memref<4x64xf32, #tpu.memory_space<vmem>>, vector<4x64xf32>
    %cst_12 = arith.constant dense<0.000000e+00> : vector<2x64xf32>
    %18 = tpu.matmul %16, %17, %cst_12 {dimension_numbers = #tpu.dot_dimension_numbers<[1], [0], [0], [1], [0, 0, 1, 1], [], []>} : vector<2x4xf32>, vector<4x64xf32>, vector<2x64xf32> -> vector<2x64xf32>
    %c0_13 = arith.constant 0 : index
    %c0_14 = arith.constant 0 : index
    %19 = vector.load %arg5[%c0_13, %c0_14] : memref<1x64xf32, #tpu.memory_space<vmem>>, vector<1x64xf32>
    %20 = vector.broadcast %19 : vector<1x64xf32> to vector<2x64xf32>
    %21 = arith.addf %18, %20 : vector<2x64xf32>
    %22 = vector.extract_strided_slice %21 {offsets = [0, 0], sizes = [1, 64], strides = [1, 1]} : vector<2x64xf32> to vector<1x64xf32>
    %23 = vector.extract_strided_slice %21 {offsets = [1, 0], sizes = [1, 64], strides = [1, 1]} : vector<2x64xf32> to vector<1x64xf32>
    %24 = arith.addf %22, %23 : vector<1x64xf32>
    %25 = arith.negf %24 : vector<1x64xf32>
    %26 = math.exp %25 : vector<1x64xf32>
    %cst_15 = arith.constant 1.000000e+00 : f32
    %27 = vector.broadcast %cst_15 : f32 to vector<1x64xf32>
    %28 = arith.addf %27, %26 : vector<1x64xf32>
    %29 = arith.divf %27, %28 : vector<1x64xf32>
    %c0_16 = arith.constant 0 : index
    %c0_17 = arith.constant 0 : index
    %c0_18 = arith.constant 0 : index
    %30 = vector.load %arg1[%c0_16, %c0_17, %c0_18] : memref<1x64x256xf32, #tpu.memory_space<vmem>>, vector<1x64x256xf32>
    %31 = vector.shape_cast %29 : vector<1x64xf32> to vector<1x64x1xf32>
    %32 = vector.broadcast %31 : vector<1x64x1xf32> to vector<1x64x256xf32>
    %33 = arith.mulf %30, %32 : vector<1x64x256xf32>
    %c0_19 = arith.constant 0 : index
    %c0_20 = arith.constant 0 : index
    %c0_21 = arith.constant 0 : index
    %34 = vector.load %arg6[%c0_19, %c0_20, %c0_21] : memref<1x64x256xf32, #tpu.memory_space<vmem>>, vector<1x64x256xf32>
    tpu.vector_store %arg6[%c0_19, %c0_20, %c0_21], %33 {strides = array<i32>} : memref<1x64x256xf32, #tpu.memory_space<vmem>>, vector<1x64x256xf32>,
    return
  }
  func.func @transform_0(%arg0: i32) -> (i32, i32, i32) {
    %c0_i32 = arith.constant 0 : i32
    %c0_i32_0 = arith.constant 0 : i32
    %c0_i32_1 = arith.constant 0 : i32
    return %arg0, %c0_i32, %c0_i32_0 : i32, i32, i32
  }
  func.func @transform_1(%arg0: i32) -> (i32, i32) {
    %c0_i32 = arith.constant 0 : i32
    %c0_i32_0 = arith.constant 0 : i32
    %c0_i32_1 = arith.constant 0 : i32
    return %c0_i32, %c0_i32_0 : i32, i32
  }
  func.func @transform_2(%arg0: i32) -> (i32, i32) {
    %c0_i32 = arith.constant 0 : i32
    %c0_i32_0 = arith.constant 0 : i32
    %c0_i32_1 = arith.constant 0 : i32
    return %c0_i32, %c0_i32_0 : i32, i32
  }
  func.func @transform_3(%arg0: i32) -> (i32, i32) {
    %c0_i32 = arith.constant 0 : i32
    %c0_i32_0 = arith.constant 0 : i32
    %c0_i32_1 = arith.constant 0 : i32
    return %c0_i32, %c0_i32_0 : i32, i32
  }
  func.func @transform_4(%arg0: i32) -> (i32, i32) {
    %c0_i32 = arith.constant 0 : i32
    %c0_i32_0 = arith.constant 0 : i32
    %c0_i32_1 = arith.constant 0 : i32
    return %c0_i32, %c0_i32_0 : i32, i32
  }
  func.func @transform_5(%arg0: i32) -> (i32, i32, i32) {
    %c0_i32 = arith.constant 0 : i32
    %c0_i32_0 = arith.constant 0 : i32
    %c0_i32_1 = arith.constant 0 : i32
    return %arg0, %c0_i32, %c0_i32_0 : i32, i32, i32
  }
}

</mosaic_0001>

<llo_original>
// kernel: tpu_custom_call.1
$region0: #{tpu_custom_call.1}
  #allocation0 [shape = 'u32[]', space=smem, size = 0x4, offset = 0x4, fixed_abs, tag = 'smem constant byte address 0x4 - core index']
  #allocation1 [shape = 'u32[72,128]{1,0:T(1,128)}', space=vmem, size = 0x9000, scoped, tag = 'internal scratch']
  %s0 = inlined_call_operand.hbm [shape: f32[2,64,256], index: 0, kind: input, shape index: {}]
  %s1 = inlined_call_operand.vmem [shape: f32[64,4], index: 1, kind: input, shape index: {}]
  %s2 = inlined_call_operand.vmem [shape: f32[1,4], index: 2, kind: input, shape index: {}]
  %s3 = inlined_call_operand.vmem [shape: f32[4,64], index: 3, kind: input, shape index: {}]
  %s4 = inlined_call_operand.vmem [shape: f32[1,64], index: 4, kind: input, shape index: {}]
  %s5 = inlined_call_operand.hbm [shape: f32[2,64,256], index: 5, kind: output, shape index: {}]
  %s6 = sld [smem:[#allocation0]]
  $region57: #{tpu_custom_call.1} parent=0
    _
  %s8 = ssub.s32 1, %s6
  %s9 = scalar_select 0, %s8, %s6
  $region1: #{tpu_custom_call.1} parent=0
    #allocation2 [shape = 'u8[131072]{0}', space=vmem, size = 0x20000, scoped, tag = 'input window, operand 0']
    #allocation3 [shape = 's32[2]{0}', space=sflag, size = 0x8, scoped, tag = 'scoped memory for tpu_custom_call.1']
    #allocation4 [shape = 's32[2]{0}', space=sflag, size = 0x8, scoped, tag = 'scoped memory for tpu_custom_call.1']
    #allocation5 [shape = 'u8[131072]{0}', space=vmem, size = 0x20000, scoped, tag = 'output window, operand 0']
    %10 = vsyncpa [#allocation3], 0
    %s11 = scalar_lea.sflag [#allocation3], 1
    %12 = vsyncpa %s11, 0
    %13 = vsyncpa [#allocation4], 0
    %s14 = scalar_lea.sflag [#allocation4], 1
    %15 = vsyncpa %s14, 0
    loop: start=0, step=1, limit=4
    $region2: #{tpu_custom_call.1} parent=1 // loop_pre_header
      _
    $region3: #{tpu_custom_call.1} parent=1 // loop_header
      %s17 = sphi 0, %s21
      %p18 = scmp.ge.s32.totalorder %s17, 4
      %s27 = sphi 0, %s29
      %s30 = sphi 0, %s27
      %s31 = sphi 0, %s30
      %s47 = sphi 0, %s31
      %s51 = sphi 0, %s51
      %s53 = sphi 0, %s51
      %s54 = sphi 0, %s53
      %s68 = sphi 0, %s54
      %s72 = sphi 0, %s72
      %s74 = sphi 0, %s72
      %s75 = sphi 0, %s74
      %s89 = sphi 0, %s75
      %s93 = sphi 0, %s93
      %s95 = sphi 0, %s93
      %s96 = sphi 0, %s95
      %s110 = sphi 0, %s96
      %s114 = sphi 0, %s114
      %s116 = sphi 0, %s114
      %s117 = sphi 0, %s116
      %s131 = sphi 0, %s117
      %s137 = sphi 0, %s139
      %s140 = sphi 0, %s137
      %s141 = sphi 0, %s140
      %s157 = sphi 0, %s141
    $region4: #{tpu_custom_call.1} parent=1 // loop_header_branch
      %20 = sbr.rel (%p18) target = $region8
    $region5: #{tpu_custom_call.1} parent=1 // loop_body
      %s22 = ssub.s32 %s17, 1
      %s23 = ssub.s32 %s17, 2
      %s24 = sadd.s32 %s17, 1
      %s25 = ssub.s32 %s17, %s24
      %p26 = scmp.eq.s32.totalorder %s25, 0
      %s28 = sadd.s32 %s27, 1
      %s29 = scalar_select %p26, %s27, %s28
      %p32 = pneg %p26
      %p33 = scmp.eq.s32.totalorder %s17, 1
      %p34 = por %p32, %p33
      %p35 = scmp.ne.s32.totalorder %s27, %s30
      %p36 = scmp.eq.s32.totalorder %s17, 0
      %p37 = por %p35, %p36
      %p38 = scmp.ne.s32.totalorder %s27, %s30
      %p39 = scmp.eq.s32.totalorder %s22, 1
      %p40 = por %p38, %p39
      %p41 = scmp.ne.s32.totalorder %s30, %s31
      %p42 = scmp.eq.s32.totalorder %s22, 0
      %p43 = por %p41, %p42
      %p44 = scmp.ne.s32.totalorder %s30, %s31
      %p45 = scmp.eq.s32.totalorder %s23, 1
      %p46 = por %p44, %p45
      %p48 = scmp.ne.s32.totalorder %s31, %s47
      %p49 = scmp.eq.s32.totalorder %s23, 0
      %p50 = por %p48, %p49
      %s52 = sadd.s32 %s51, 1
      %p55 = scmp.eq.s32.totalorder %s17, 1
      %p56 = scmp.ne.s32.totalorder %s51, %s53
      %p57 = scmp.eq.s32.totalorder %s17, 0
      %p58 = por %p56, %p57
      %p59 = scmp.ne.s32.totalorder %s51, %s53
      %p60 = scmp.eq.s32.totalorder %s22, 1
      %p61 = por %p59, %p60
      %p62 = scmp.ne.s32.totalorder %s53, %s54
      %p63 = scmp.eq.s32.totalorder %s22, 0
      %p64 = por %p62, %p63
      %p65 = scmp.ne.s32.totalorder %s53, %s54
      %p66 = scmp.eq.s32.totalorder %s23, 1
      %p67 = por %p65, %p66
      %p69 = scmp.ne.s32.totalorder %s54, %s68
      %p70 = scmp.eq.s32.totalorder %s23, 0
      %p71 = por %p69, %p70
      %s73 = sadd.s32 %s72, 1
      %p76 = scmp.eq.s32.totalorder %s17, 1
      %p77 = scmp.ne.s32.totalorder %s72, %s74
      %p78 = scmp.eq.s32.totalorder %s17, 0
      %p79 = por %p77, %p78
      %p80 = scmp.ne.s32.totalorder %s72, %s74
      %p81 = scmp.eq.s32.totalorder %s22, 1
      %p82 = por %p80, %p81
      %p83 = scmp.ne.s32.totalorder %s74, %s75
      %p84 = scmp.eq.s32.totalorder %s22, 0
      %p85 = por %p83, %p84
      %p86 = scmp.ne.s32.totalorder %s74, %s75
      %p87 = scmp.eq.s32.totalorder %s23, 1
      %p88 = por %p86, %p87
      %p90 = scmp.ne.s32.totalorder %s75, %s89
      %p91 = scmp.eq.s32.totalorder %s23, 0
      %p92 = por %p90, %p91
      %s94 = sadd.s32 %s93, 1
      %p97 = scmp.eq.s32.totalorder %s17, 1
      %p98 = scmp.ne.s32.totalorder %s93, %s95
      %p99 = scmp.eq.s32.totalorder %s17, 0
      %p100 = por %p98, %p99
      %p101 = scmp.ne.s32.totalorder %s93, %s95
      %p102 = scmp.eq.s32.totalorder %s22, 1
      %p103 = por %p101, %p102
      %p104 = scmp.ne.s32.totalorder %s95, %s96
      %p105 = scmp.eq.s32.totalorder %s22, 0
      %p106 = por %p104, %p105
      %p107 = scmp.ne.s32.totalorder %s95, %s96
      %p108 = scmp.eq.s32.totalorder %s23, 1
      %p109 = por %p107, %p108
      %p111 = scmp.ne.s32.totalorder %s96, %s110
      %p112 = scmp.eq.s32.totalorder %s23, 0
      %p113 = por %p111, %p112
      %s115 = sadd.s32 %s114, 1
      %p118 = scmp.eq.s32.totalorder %s17, 1
      %p119 = scmp.ne.s32.totalorder %s114, %s116
      %p120 = scmp.eq.s32.totalorder %s17, 0
      %p121 = por %p119, %p120
      %p122 = scmp.ne.s32.totalorder %s114, %s116
      %p123 = scmp.eq.s32.totalorder %s22, 1
      %p124 = por %p122, %p123
      %p125 = scmp.ne.s32.totalorder %s116, %s117
      %p126 = scmp.eq.s32.totalorder %s22, 0
      %p127 = por %p125, %p126
      %p128 = scmp.ne.s32.totalorder %s116, %s117
      %p129 = scmp.eq.s32.totalorder %s23, 1
      %p130 = por %p128, %p129
      %p132 = scmp.ne.s32.totalorder %s117, %s131
      %p133 = scmp.eq.s32.totalorder %s23, 0
      %p134 = por %p132, %p133
      %s135 = ssub.s32 %s17, %s24
      %p136 = scmp.eq.s32.totalorder %s135, 0
      %s138 = sadd.s32 %s137, 1
      %s139 = scalar_select %p136, %s137, %s138
      %p142 = pneg %p136
      %p143 = scmp.eq.s32.totalorder %s17, 1
      %p144 = por %p142, %p143
      %p145 = scmp.ne.s32.totalorder %s137, %s140
      %p146 = scmp.eq.s32.totalorder %s17, 0
      %p147 = por %p145, %p146
      %p148 = scmp.ne.s32.totalorder %s137, %s140
      %p149 = scmp.eq.s32.totalorder %s22, 1
      %p150 = por %p148, %p149
      %p151 = scmp.ne.s32.totalorder %s140, %s141
      %p152 = scmp.eq.s32.totalorder %s22, 0
      %p153 = por %p151, %p152
      %p154 = scmp.ne.s32.totalorder %s140, %s141
      %p155 = scmp.eq.s32.totalorder %s23, 1
      %p156 = por %p154, %p155
      %p158 = scmp.ne.s32.totalorder %s141, %s157
      %p159 = scmp.eq.s32.totalorder %s23, 0
      %p160 = por %p158, %p159
      %p161 = scmp.le.s32.totalorder 1, %s17
      %p162 = scmp.lt.s32.totalorder %s17, 3
      %p163 = pnand %p161, %p162
      %p164 = pneg %p163
      // Predicated region
      $region9: #{tpu_custom_call.1} parent=5 // pred_check
        _
      $region10: #{tpu_custom_call.1} parent=5 // pred_check_branch
        %166 = sbr.rel (%p163) target = $region12
      $region11: #{tpu_custom_call.1} parent=5 // pred_region
        %s167 = ssub.s32 %s17, 1
        // Predicated region
        $region13: #{tpu_custom_call.1} parent=11 // pred_check
          %p168 = pneg %p64
        $region14: #{tpu_custom_call.1} parent=11 // pred_check_branch
          %170 = sbr.rel (%p168) target = $region16
        $region15: #{tpu_custom_call.1} parent=11 // pred_region
          _
        $region16: #{tpu_custom_call.1} parent=11 // pred_fallthru
          _
        // Predicated region
        $region17: #{tpu_custom_call.1} parent=11 // pred_check
          %p171 = pneg %p85
        $region18: #{tpu_custom_call.1} parent=11 // pred_check_branch
          %173 = sbr.rel (%p171) target = $region20
        $region19: #{tpu_custom_call.1} parent=11 // pred_region
          _
        $region20: #{tpu_custom_call.1} parent=11 // pred_fallthru
          _
        // Predicated region
        $region21: #{tpu_custom_call.1} parent=11 // pred_check
          %p174 = pneg %p106
        $region22: #{tpu_custom_call.1} parent=11 // pred_check_branch
          %176 = sbr.rel (%p174) target = $region24
        $region23: #{tpu_custom_call.1} parent=11 // pred_region
          _
        $region24: #{tpu_custom_call.1} parent=11 // pred_fallthru
          _
        // Predicated region
        $region25: #{tpu_custom_call.1} parent=11 // pred_check
          %p177 = pneg %p127
        $region26: #{tpu_custom_call.1} parent=11 // pred_check_branch
          %179 = sbr.rel (%p177) target = $region28
        $region27: #{tpu_custom_call.1} parent=11 // pred_region
          _
        $region28: #{tpu_custom_call.1} parent=11 // pred_fallthru
          _
      $region12: #{tpu_custom_call.1} parent=5 // pred_fallthru
        _
      %p180 = scmp.lt.s32.totalorder %s17, 2
      // Predicated region
      $region29: #{tpu_custom_call.1} parent=5 // pred_check
        %p181 = pneg %p180
      $region30: #{tpu_custom_call.1} parent=5 // pred_check_branch
        %183 = sbr.rel (%p181) target = $region32
      $region31: #{tpu_custom_call.1} parent=5 // pred_region
        // Predicated region
        $region33: #{tpu_custom_call.1} parent=31 // pred_check
          %p184 = pneg %p37
        $region34: #{tpu_custom_call.1} parent=31 // pred_check_branch
          %186 = sbr.rel (%p184) target = $region36
        $region35: #{tpu_custom_call.1} parent=31 // pred_region
          %s187 = sand.u32 %s27, 1
          %s188 = scalar_lea.sflag [#allocation3], %s187
          %s189 = sand.u32 %s27, 1
          %s190 = smul.addr %s189, 128
          %s191 = scalar_lea.vmem [#allocation2], %s190
          %193 = vsyncadd %s188, 0
          %s194 = smul.addr %s17, 16
          %s195 = smul.addr %s194, 8
          %s196 = scalar_lea.hbm %s0, %s195
          %s197 = sshll.u32 %s196, 4
          %s198 = int_to_ptr.hbm [resolvable:$true] %s197
          %s199 = sshll.u32 %s191, 4
          %s200 = int_to_ptr.vmem [resolvable:$true] %s199
          %205 = dma.hbm_to_vmem [thread:$0]  %s198, 2048, %s200, %s188, 256, 256, 16
        $region36: #{tpu_custom_call.1} parent=31 // pred_fallthru
          _
      $region32: #{tpu_custom_call.1} parent=5 // pred_fallthru
        _
      %p206 = scmp.le.s32.totalorder 1, %s17
      %p207 = scmp.lt.s32.totalorder %s17, 3
      %p208 = pnand %p206, %p207
      %p209 = pneg %p208
      // Predicated region
      $region37: #{tpu_custom_call.1} parent=5 // pred_check
        _
      $region38: #{tpu_custom_call.1} parent=5 // pred_check_branch
        %211 = sbr.rel (%p208) target = $region40
      $region39: #{tpu_custom_call.1} parent=5 // pred_region
        %s212 = ssub.s32 %s17, 1
        %s213 = sand.u32 %s30, 1
        %s214 = scalar_lea.sflag [#allocation3], %s213
        %s215 = sand.u32 %s30, 1
        %s216 = smul.addr %s215, 128
        %s217 = scalar_lea.vmem [#allocation2], %s216
        // Predicated region
        $region41: #{tpu_custom_call.1} parent=39 // pred_check
          %p218 = pneg %p43
        $region42: #{tpu_custom_call.1} parent=39 // pred_check_branch
          %220 = sbr.rel (%p218) target = $region44
        $region43: #{tpu_custom_call.1} parent=39 // pred_region
          %222 = dma.done %s214, 2048
        $region44: #{tpu_custom_call.1} parent=39 // pred_fallthru
          _
        %s223 = sand.u32 %s30, 1
        %s224 = scalar_lea.sflag [#allocation3], %s223
        %s225 = sand.u32 %s30, 1
        %s226 = smul.addr %s225, 128
        %s227 = scalar_lea.vmem [#allocation2], %s226
        %p228 = pneg %p43
        %p229 = pneg %p40
        %p230 = pneg %p64
        %p231 = pneg %p61
        %p232 = pneg %p85
        %p233 = pneg %p82
        %p234 = pneg %p106
        %p235 = pneg %p103
        %p236 = pneg %p127
        %p237 = pneg %p124
        %p238 = pneg %p153
        %p239 = pneg %p150
        %s240 = sand.u32 %s140, 1
        %s241 = scalar_lea.sflag [#allocation4], %s240
        %s242 = sand.u32 %s140, 1
        %s243 = smul.addr %s242, 128
        %s244 = scalar_lea.vmem [#allocation5], %s243
        %v245 = vld [vmem:[%s217] sm:$0xff]
        %v246 = vld [vmem:[%s217 + $0x8] sm:$0xff]
        %v247 = vld [vmem:[%s217 + $0x10] sm:$0xff]
        %v248 = vld [vmem:[%s217 + $0x18] sm:$0xff]
        %v249 = vld [vmem:[%s217 + $0x20] sm:$0xff]
        %v250 = vld [vmem:[%s217 + $0x28] sm:$0xff]
        %v251 = vld [vmem:[%s217 + $0x30] sm:$0xff]
        %v252 = vld [vmem:[%s217 + $0x38] sm:$0xff]
        %v253 = vld [vmem:[%s217 + $0x40] sm:$0xff]
        %v254 = vld [vmem:[%s217 + $0x48] sm:$0xff]
        %v255 = vld [vmem:[%s217 + $0x50] sm:$0xff]
        %v256 = vld [vmem:[%s217 + $0x58] sm:$0xff]
        %v257 = vld [vmem:[%s217 + $0x60] sm:$0xff]
        %v258 = vld [vmem:[%s217 + $0x68] sm:$0xff]
        %v259 = vld [vmem:[%s217 + $0x70] sm:$0xff]
        %v260 = vld [vmem:[%s217 + $0x78] sm:$0xff]
        %v261 = vadd.f32 %v245, %v246
        %262 = vadd.xlane.f32.xlu0 %v261
        %v263 = vpop.xlane.xlu0 %262
        %v264 = vadd.f32 %v247, %v248
        %265 = vadd.xlane.f32.xlu0 %v264
        %v266 = vpop.xlane.xlu0 %265
        %v267 = vadd.f32 %v249, %v250
        %268 = vadd.xlane.f32.xlu0 %v267
        %v269 = vpop.xlane.xlu0 %268
        %v270 = vadd.f32 %v251, %v252
        %271 = vadd.xlane.f32.xlu0 %v270
        %v272 = vpop.xlane.xlu0 %271
        %v273 = vadd.f32 %v253, %v254
        %274 = vadd.xlane.f32.xlu0 %v273
        %v275 = vpop.xlane.xlu0 %274
        %v276 = vadd.f32 %v255, %v256
        %277 = vadd.xlane.f32.xlu0 %v276
        %v278 = vpop.xlane.xlu0 %277
        %v279 = vadd.f32 %v257, %v258
        %280 = vadd.xlane.f32.xlu0 %v279
        %v281 = vpop.xlane.xlu0 %280
        %v282 = vadd.f32 %v259, %v260
        %283 = vadd.xlane.f32.xlu0 %v282
        %v284 = vpop.xlane.xlu0 %283
        %v285 = vmul.f32 %v263, 0.00390625
        %v286 = vmul.f32 %v266, 0.00390625
        %v287 = vmul.f32 %v269, 0.00390625
        %v288 = vmul.f32 %v272, 0.00390625
        %v289 = vmul.f32 %v275, 0.00390625
        %v290 = vmul.f32 %v278, 0.00390625
        %v291 = vmul.f32 %v281, 0.00390625
        %v292 = vmul.f32 %v284, 0.00390625
        %v293 = vmax.f32 %v245, %v246
        %294 = vmax.xlane.f32.xlu0 %v293
        %v295 = vpop.xlane.xlu0 %294
        %v296 = vmax.f32 %v247, %v248
        %297 = vmax.xlane.f32.xlu0 %v296
        %v298 = vpop.xlane.xlu0 %297
        %v299 = vmax.f32 %v249, %v250
        %300 = vmax.xlane.f32.xlu0 %v299
        %v301 = vpop.xlane.xlu0 %300
        %v302 = vmax.f32 %v251, %v252
        %303 = vmax.xlane.f32.xlu0 %v302
        %v304 = vpop.xlane.xlu0 %303
        %v305 = vmax.f32 %v253, %v254
        %306 = vmax.xlane.f32.xlu0 %v305
        %v307 = vpop.xlane.xlu0 %306
        %v308 = vmax.f32 %v255, %v256
        %309 = vmax.xlane.f32.xlu0 %v308
        %v310 = vpop.xlane.xlu0 %309
        %v311 = vmax.f32 %v257, %v258
        %312 = vmax.xlane.f32.xlu0 %v311
        %v313 = vpop.xlane.xlu0 %312
        %v314 = vmax.f32 %v259, %v260
        %315 = vmax.xlane.f32.xlu0 %v314
        %v316 = vpop.xlane.xlu0 %315
        %v325 = vlaneseq
        %v326 = vand.u32 %v325, 127
        %v327 = vperm.slane %v285, %v326
        %v328 = vadd.s32 %v326, 4294967288
        %v329 = vperm.slane %v286, %v328
        %vm330 = vcmask 130112
        %v331 = vsel %vm330, %v329, %v327
        %v332 = vadd.s32 %v326, 4294967280
        %v333 = vperm.slane %v287, %v332
        %vm334 = vcmask 195712
        %v335 = vsel %vm334, %v333, %v331
        %v336 = vadd.s32 %v326, 4294967272
        %v337 = vperm.slane %v288, %v336
        %vm338 = vcmask 261312
        %v339 = vsel %vm338, %v337, %v335
        %v340 = vadd.s32 %v326, 4294967264
        %v341 = vperm.slane %v289, %v340
        %vm342 = vcmask 326912
        %v343 = vsel %vm342, %v341, %v339
        %v344 = vadd.s32 %v326, 4294967256
        %v345 = vperm.slane %v290, %v344
        %vm346 = vcmask 392512
        %v347 = vsel %vm346, %v345, %v343
        %v348 = vadd.s32 %v326, 4294967248
        %v349 = vperm.slane %v291, %v348
        %vm350 = vcmask 458112
        %v351 = vsel %vm350, %v349, %v347
        %v352 = vadd.s32 %v326, 4294967240
        %v353 = vperm.slane %v292, %v352
        %vm354 = vcmask 523712
        %v355 = vsel %vm354, %v353, %v351
        %v365 = vperm.slane %v295, %v326
        %v366 = vperm.slane %v298, %v328
        %v367 = vsel %vm330, %v366, %v365
        %v368 = vperm.slane %v301, %v332
        %v369 = vsel %vm334, %v368, %v367
        %v370 = vperm.slane %v304, %v336
        %v371 = vsel %vm338, %v370, %v369
        %v372 = vperm.slane %v307, %v340
        %v373 = vsel %vm342, %v372, %v371
        %v374 = vperm.slane %v310, %v344
        %v375 = vsel %vm346, %v374, %v373
        %v376 = vperm.slane %v313, %v348
        %v377 = vsel %vm350, %v376, %v375
        %v378 = vperm.slane %v316, %v352
        %v379 = vsel %vm354, %v378, %v377
        %vm381 = vcmask 1040384
        %v382 = vsel %vm381, %v355, %v379
        %v383 = vld [vmem:[%s1] sm:$0xff]
        %v384 = vld [vmem:[%s1 + $0x8] sm:$0xff]
        %v385 = vld [vmem:[%s1 + $0x10] sm:$0xff]
        %v386 = vld [vmem:[%s1 + $0x18] sm:$0xff]
        %v387 = vld [vmem:[%s1 + $0x20] sm:$0xff]
        %v388 = vld [vmem:[%s1 + $0x28] sm:$0xff]
        %v389 = vld [vmem:[%s1 + $0x30] sm:$0xff]
        %v390 = vld [vmem:[%s1 + $0x38] sm:$0xff]
        %v391 = vld [vmem:[%s2] sm:$0x1]
        %v393 = vperm.slane %v391, 0
        %vm395 = vcmask 523264
        %v397 = vsel %vm395, %v382, 0
        %399 = vmatpush.msra.mxu0 0.0
        %400 = vmatpush.msra.mxu0 0.0
        %401 = vmatpush.msra.mxu0 0.0
        %402 = vmatpush.msra.mxu0 0.0
        %403 = vmatpush.msra.mxu0 0.0
        %404 = vmatpush.msra.mxu0 0.0
        %405 = vmatpush.msra.mxu0 0.0
        %406 = vmatpush.msra.mxu0 0.0
        %407 = vmatpush.msra.mxu0 %v390
        %408 = vmatpush.msra.mxu0 %v389
        %409 = vmatpush.msra.mxu0 %v388
        %410 = vmatpush.msra.mxu0 %v387
        %411 = vmatpush.msra.mxu0 %v386
        %412 = vmatpush.msra.mxu0 %v385
        %413 = vmatpush.msra.mxu0 %v384
        %414 = vmatpush.msra.mxu0 %v383
        %415 = vmatmul.f32.gmra.mxu0 %v397
        %v416 = vpop.f32.mrf.mxu0
        %v417 = vadd.f32 %v393, %v416
        %418 = vdwg.mxu0
        %v419 = vxor.u32 %v417, 2147483648
        %v420 = vmul.f32 %v419, 1.442695
        %v421 = vpow.pop %v420
        %v422 = vadd.f32 %v421, 1.0
        %v423 = vrcp.pop %v422
        %v424 = vmul.f32 %v422, %v423
        %v425 = vsub.f32 1.0, %v424
        %v426 = vmul.f32 %v423, %v425
        %v427 = vadd.f32 %v423, %v426
        %vm428 = vweird.f32 %v422
        %vm429 = vweird.f32 %v423
        %vm430 = vmor %vm428, %vm429
        %v431 = vsel %vm430, %v423, %v427
        %v432 = vand.u32 2147483647, %v422
        %vm433 = vcmp.eq.f32.partialorder %v432, 8.507059e+37
        %v434 = vand.u32 %v422, 2147483648
        %v435 = vor.u32 1.1754944e-38, %v434
        %v436 = vsel %vm433, %v435, %v431
        %v437 = vmul.f32 1.0, %v436
        %v438 = vmul.f32 %v417, %v437
        %v439 = vld [vmem:[%s3] sm:$0xf]
        %v440 = vld [vmem:[%s4] sm:$0x1]
        %v442 = vperm.slane %v440, 0
        %vm444 = vcmask 31744
        %v446 = vsel %vm444, %v438, 0
        %vm448 = vcmask 1043456
        %v450 = vsel %vm448, %v439, 0
        %452 = vmatpush.msra.mxu0 0.0
        %453 = vmatpush.msra.mxu0 0.0
        %454 = vmatpush.msra.mxu0 0.0
        %455 = vmatpush.msra.mxu0 0.0
        %456 = vmatpush.msra.mxu0 0.0
        %457 = vmatpush.msra.mxu0 0.0
        %458 = vmatpush.msra.mxu0 0.0
        %459 = vmatpush.msra.mxu0 0.0
        %460 = vmatpush.msra.mxu0 0.0
        %461 = vmatpush.msra.mxu0 0.0
        %462 = vmatpush.msra.mxu0 0.0
        %463 = vmatpush.msra.mxu0 0.0
        %464 = vmatpush.msra.mxu0 0.0
        %465 = vmatpush.msra.mxu0 0.0
        %466 = vmatpush.msra.mxu0 0.0
        %467 = vmatpush.msra.mxu0 %v450
        %468 = vmatmul.f32.gmra.mxu0 %v446
        %v469 = vpop.f32.mrf.mxu0
        %v470 = vadd.f32 %v442, %v469
        %471 = vdwg.mxu0
        %v473 = vrot.slane %v470, 1
        %v475 = vadd.f32 %v470, %v473
        %v476 = vxor.u32 %v475, 2147483648
        %v477 = vmul.f32 %v476, 1.442695
        %v478 = vpow.pop %v477
        %v479 = vadd.f32 %v478, 1.0
        %v480 = vrcp.pop %v479
        %v481 = vmul.f32 %v479, %v480
        %v482 = vsub.f32 1.0, %v481
        %v483 = vmul.f32 %v480, %v482
        %v484 = vadd.f32 %v480, %v483
        %vm485 = vweird.f32 %v479
        %vm486 = vweird.f32 %v480
        %vm487 = vmor %vm485, %vm486
        %v488 = vsel %vm487, %v480, %v484
        %v489 = vand.u32 2147483647, %v479
        %vm490 = vcmp.eq.f32.partialorder %v489, 8.507059e+37
        %v491 = vand.u32 %v479, 2147483648
        %v492 = vor.u32 1.1754944e-38, %v491
        %v493 = vsel %vm490, %v492, %v488
        %v494 = vmul.f32 1.0, %v493
        %v495 = vperm.slane %v494, 0
        %v496 = vlaneseq
        %v497 = vshrl.u32 %v496, 7
        %499 = vset.pattern.permute.xlu0 %v497
        %500 = vperm.xlu0 %499, %v495
        %v501 = vpop.permute.xlu0 %500
        %v502 = vlaneseq
        %v503 = vshrl.u32 %v502, 7
        %v504 = vadd.s32 %v503, 8
        %505 = vset.pattern.permute.xlu0 %v504
        %506 = vperm.xlu0 %505, %v495
        %v507 = vpop.permute.xlu0 %506
        %v508 = vlaneseq
        %v509 = vshrl.u32 %v508, 7
        %v510 = vadd.s32 %v509, 16
        %511 = vset.pattern.permute.xlu0 %v510
        %512 = vperm.xlu0 %511, %v495
        %v513 = vpop.permute.xlu0 %512
        %v514 = vlaneseq
        %v515 = vshrl.u32 %v514, 7
        %v516 = vadd.s32 %v515, 24
        %517 = vset.pattern.permute.xlu0 %v516
        %518 = vperm.xlu0 %517, %v495
        %v519 = vpop.permute.xlu0 %518
        %v520 = vlaneseq
        %v521 = vshrl.u32 %v520, 7
        %v522 = vadd.s32 %v521, 32
        %523 = vset.pattern.permute.xlu0 %v522
        %524 = vperm.xlu0 %523, %v495
        %v525 = vpop.permute.xlu0 %524
        %v526 = vlaneseq
        %v527 = vshrl.u32 %v526, 7
        %v528 = vadd.s32 %v527, 40
        %529 = vset.pattern.permute.xlu0 %v528
        %530 = vperm.xlu0 %529, %v495
        %v531 = vpop.permute.xlu0 %530
        %v532 = vlaneseq
        %v533 = vshrl.u32 %v532, 7
        %v534 = vadd.s32 %v533, 48
        %535 = vset.pattern.permute.xlu0 %v534
        %536 = vperm.xlu0 %535, %v495
        %v537 = vpop.permute.xlu0 %536
        %v538 = vlaneseq
        %v539 = vshrl.u32 %v538, 7
        %v540 = vadd.s32 %v539, 56
        %541 = vset.pattern.permute.xlu0 %v540
        %542 = vperm.xlu0 %541, %v495
        %v543 = vpop.permute.xlu0 %542
        %v544 = vmul.f32 %v245, %v501
        %v545 = vmul.f32 %v246, %v501
        %v546 = vmul.f32 %v247, %v507
        %v547 = vmul.f32 %v248, %v507
        %v548 = vmul.f32 %v249, %v513
        %v549 = vmul.f32 %v250, %v513
        %v550 = vmul.f32 %v251, %v519
        %v551 = vmul.f32 %v252, %v519
        %v552 = vmul.f32 %v253, %v525
        %v553 = vmul.f32 %v254, %v525
        %v554 = vmul.f32 %v255, %v531
        %v555 = vmul.f32 %v256, %v531
        %v556 = vmul.f32 %v257, %v537
        %v557 = vmul.f32 %v258, %v537
        %v558 = vmul.f32 %v259, %v543
        %v559 = vmul.f32 %v260, %v543
        %560 = vst [vmem:[%s244] sm:$0xff] %v544
        %561 = vst [vmem:[%s244 + $0x8] sm:$0xff] %v545
        %562 = vst [vmem:[%s244 + $0x10] sm:$0xff] %v546
        %563 = vst [vmem:[%s244 + $0x18] sm:$0xff] %v547
        %564 = vst [vmem:[%s244 + $0x20] sm:$0xff] %v548
        %565 = vst [vmem:[%s244 + $0x28] sm:$0xff] %v549
        %566 = vst [vmem:[%s244 + $0x30] sm:$0xff] %v550
        %567 = vst [vmem:[%s244 + $0x38] sm:$0xff] %v551
        %568 = vst [vmem:[%s244 + $0x40] sm:$0xff] %v552
        %569 = vst [vmem:[%s244 + $0x48] sm:$0xff] %v553
        %570 = vst [vmem:[%s244 + $0x50] sm:$0xff] %v554
        %571 = vst [vmem:[%s244 + $0x58] sm:$0xff] %v555
        %572 = vst [vmem:[%s244 + $0x60] sm:$0xff] %v556
        %573 = vst [vmem:[%s244 + $0x68] sm:$0xff] %v557
        %574 = vst [vmem:[%s244 + $0x70] sm:$0xff] %v558
        %575 = vst [vmem:[%s244 + $0x78] sm:$0xff] %v559
        %s576 = sand.u32 %s140, 1
        %s577 = scalar_lea.sflag [#allocation4], %s576
        %s578 = sand.u32 %s140, 1
        %s579 = smul.addr %s578, 128
        %s580 = scalar_lea.vmem [#allocation5], %s579
        // Predicated region
        $region45: #{tpu_custom_call.1} parent=39 // pred_check
          %p581 = pneg %p150
        $region46: #{tpu_custom_call.1} parent=39 // pred_check_branch
          %583 = sbr.rel (%p581) target = $region48
        $region47: #{tpu_custom_call.1} parent=39 // pred_region
          %585 = vsyncadd %s577, 0
          %s586 = smul.addr %s22, 16
          %s587 = smul.addr %s586, 8
          %s588 = scalar_lea.hbm %s5, %s587
          %s589 = sshll.u32 %s580, 4
          %s590 = int_to_ptr.vmem [resolvable:$true] %s589
          %s591 = sshll.u32 %s588, 4
          %s592 = int_to_ptr.hbm [resolvable:$true] %s591
          %597 = dma.vmem_to_hbm [thread:$0]  %s590, 2048, %s592, %s577, 256, 256, 16
        $region48: #{tpu_custom_call.1} parent=39 // pred_fallthru
          _
      $region40: #{tpu_custom_call.1} parent=5 // pred_fallthru
        _
      %p598 = scmp.le.s32.totalorder 2, %s17
      // Predicated region
      $region49: #{tpu_custom_call.1} parent=5 // pred_check
        %p599 = pneg %p598
      $region50: #{tpu_custom_call.1} parent=5 // pred_check_branch
        %601 = sbr.rel (%p599) target = $region52
      $region51: #{tpu_custom_call.1} parent=5 // pred_region
        %s602 = ssub.s32 %s17, 2
        // Predicated region
        $region53: #{tpu_custom_call.1} parent=51 // pred_check
          %p603 = pneg %p156
        $region54: #{tpu_custom_call.1} parent=51 // pred_check_branch
          %605 = sbr.rel (%p603) target = $region56
        $region55: #{tpu_custom_call.1} parent=51 // pred_region
          %s606 = sand.u32 %s141, 1
          %s607 = scalar_lea.sflag [#allocation4], %s606
          %s608 = sand.u32 %s141, 1
          %s609 = smul.addr %s608, 128
          %s610 = scalar_lea.vmem [#allocation5], %s609
          %612 = dma.done %s607, 2048
        $region56: #{tpu_custom_call.1} parent=51 // pred_fallthru
          _
      $region52: #{tpu_custom_call.1} parent=5 // pred_fallthru
        _
    $region6: #{tpu_custom_call.1} parent=1 // loop_footer
      %s21 = sadd.s32 1, %s17
    $region7: #{tpu_custom_call.1} parent=1 // loop_footer_branch
      %16 = sbr.rel target = $region3
    $region8: #{tpu_custom_call.1} parent=1 // loop_exit
      _
    %613 = vsyncpa [#allocation3], 1
    %s614 = scalar_lea.sflag [#allocation3], 1
    %615 = vsyncpa %s614, 1
    %616 = vsyncpa [#allocation4], 1
    %s617 = scalar_lea.sflag [#allocation4], 1
    %618 = vsyncpa %s617, 1

</llo_original>
